<compile_context>
chip_gen: v7x
topology: tpu7x:2x2x1
jax: 0.10.0
libtpu: 0.0.40
codegen_flags: <defaults>
</compile_context>

<pallas_src>
import functools
import math

import jax
import jax.numpy as jnp
from jax.experimental import pallas as pl
from jax.experimental.pallas import tpu as pltpu

_MIB = 1024 * 1024


def _round_up(x, m):
    return ((x + m - 1) // m) * m


def _cdiv(a, b):
    return (a + b - 1) // b


def _tpu_info():
    """Best-effort (generation, vmem_capacity_bytes); falls back to safe defaults."""
    gen = 6
    try:
        kind = jax.devices()[0].device_kind.lower()
        for g in (7, 6, 5, 4):
            if f"v{g}" in kind:
                gen = g
                break
    except Exception:
        pass
    vmem_cap = None
    try:
        vmem_cap = int(getattr(pltpu.get_tpu_info(), "vmem_capacity_bytes"))
    except Exception:
        vmem_cap = None
    if not vmem_cap or vmem_cap <= 0:
        vmem_cap = 64 * _MIB if gen >= 7 else 128 * _MIB
    return gen, vmem_cap


def _vmem_est(tm, tk, dim, out_dim, in_itemsize, out_itemsize):
    # Double-buffered inputs (x, w1, b1, w2, b2) + double-buffered output + f32 accumulator.
    ins = 2 * (tm * dim + dim * tk + tk + tk * out_dim + out_dim) * in_itemsize
    outs = 2 * tm * out_dim * out_itemsize
    acc = tm * out_dim * 4
    return ins + outs + acc


def _ffn_kernel(x_ref, w1_ref, b1_ref, w2_ref, b2_ref, o_ref, acc_ref, *,
                approximate_gelu=False):
    # x_ref:  (tm, dim)        row tile of flattened tokens (native dtype)
    # w1_ref: (dim, tk)        fc1 weight slab (transposed)
    # b1_ref: (1, tk)          fc1 bias slab
    # w2_ref: (tk, out_dim_p)  fc2 weight slab (transposed)
    # b2_ref: (1, out_dim_p)   fc2 bias
    # o_ref:  (tm, out_dim_p)  output row tile
    # acc_ref:(tm, out_dim_p)  f32 accumulator (resident across hidden axis)
    k = pl.program_id(1)

    # fc1 partial for this hidden slab: native-dtype MXU inputs, f32 accumulation.
    h = jnp.dot(x_ref[...], w1_ref[...], preferred_element_type=jnp.float32)
    h = h + b1_ref[...].astype(jnp.float32)

    if approximate_gelu:
        # tanh approximation -> EUP slot (idle under the MXU); opt-in only.
        h = jax.nn.gelu(h, approximate=True)
    else:
        # Exact (erf-based) GELU, matching torch.nn.GELU() default.
        h = 0.5 * h * (1.0 + jax.lax.erf(h * 0.7071067811865476))

    # dropout: identity in eval mode.  # TODO(synk): training-mode dropout not implemented

    # fc2 partial: cast activation back to weight dtype for the MXU, accumulate in f32.
    partial = jnp.dot(h.astype(w2_ref.dtype), w2_ref[...],
                      preferred_element_type=jnp.float32)

    @pl.when(k == 0)
    def _():
        # Fold b2 into the first partial: no zero-init pass, no epilogue broadcast-add.
        acc_ref[...] = partial + b2_ref[...].astype(jnp.float32)

    @pl.when(k > 0)
    def _():
        acc_ref[...] += partial

    @pl.when(k == pl.num_programs(1) - 1)
    def _():
        o_ref[...] = acc_ref[...].astype(o_ref.dtype)


def feed_forward(x, w1, b1, w2, b2, *, tm=None, tk=None, approximate_gelu=False):
    """Fused fc1 -> GELU -> fc2 (dropout identity in eval).

    x: (..., dim); w1: (dim, hidden); b1: (hidden,); w2: (hidden, out); b2: (out,).
    Weights are stored transposed relative to nn.Linear ([in, out]).
    tm/tk=None -> generation-aware auto tiling; explicit values are honored (aligned).
    """
    dim = x.shape[-1]
    hidden = w1.shape[1]
    out_dim = w2.shape[1]
    lead = x.shape[:-1]
    rows = math.prod(lead) if lead else 1

    in_itemsize = x.dtype.itemsize
    out_itemsize = x.dtype.itemsize

    # Lane-dense output stores: pad ragged out_dim to a multiple of 128.
    out_dim_p = _round_up(out_dim, 128)

    gen, vmem_cap = _tpu_info()
    headroom = 12 * _MIB if gen >= 7 else 24 * _MIB
    budget = max(16 * _MIB, min(vmem_cap - headroom, (52 if gen >= 7 else 100) * _MIB))
    mxu_align = 128 if gen <= 5 else 256  # v5e: 128x128 MXU; v6e/v7x: 2x256x256

    user_tm = tm is not None
    user_tk = tk is not None
    if tm is None:
        # Weight streaming is amortized by tm: bigger on v6e/v7x (high MXU/HBM ratio).
        tm = {5: 256, 6: 512, 7: 512}.get(gen, 512)
    if tk is None:
        tk = {5: 1024, 6: 1024, 7: 512}.get(gen, 512)

    rows_aligned = _round_up(rows, 8)
    tm = _round_up(min(tm, rows_aligned), 8)
    tk_align = 128 if user_tk else mxu_align
    tk = _round_up(min(tk, _round_up(hidden, tk_align)), tk_align)

    # v7x has 2 TensorCores: keep both busy by guaranteeing >= 2 row tiles when possible.
    if gen >= 7 and not user_tm and rows_aligned >= 16 and rows_aligned // tm < 2:
        tm = _round_up(_cdiv(rows_aligned, 2), 8)

    # Fit the scoped-VMEM budget: shrink tk first (weight slabs dominate; the f32
    # accumulator is tk-independent), then tm.
    if not user_tk:
        while tk > tk_align and _vmem_est(tm, tk, dim, out_dim_p,
                                          in_itemsize, out_itemsize) > budget:
            tk = max(tk_align, tk - tk_align)
    if not user_tm:
        while tm > 8 and _vmem_est(tm, tk, dim, out_dim_p,
                                   in_itemsize, out_itemsize) > budget:
            tm = max(8, _round_up(tm // 2, 8))

    rows_p = _round_up(rows, tm)
    hidden_p = _round_up(hidden, tk)

    x2 = x.reshape(rows, dim)
    if rows_p != rows:
        x2 = jnp.pad(x2, ((0, rows_p - rows), (0, 0)))

    w1_p = w1
    b1_p = b1.reshape(1, hidden)
    if hidden_p != hidden:
        w1_p = jnp.pad(w1, ((0, 0), (0, hidden_p - hidden)))
        b1_p = jnp.pad(b1_p, ((0, 0), (0, hidden_p - hidden)))

    w2_p = w2
    b2_p = b2.reshape(1, out_dim)
    if hidden_p != hidden or out_dim_p != out_dim:
        w2_p = jnp.pad(w2, ((0, hidden_p - hidden), (0, out_dim_p - out_dim)))
    if out_dim_p != out_dim:
        b2_p = jnp.pad(b2_p, ((0, 0), (0, out_dim_p - out_dim)))

    grid = (rows_p // tm, hidden_p // tk)
    grid_i = grid[0]

    est = _vmem_est(tm, tk, dim, out_dim_p, in_itemsize, out_itemsize)
    vmem_limit = int(min(max(2 * est, 32 * _MIB), vmem_cap - headroom))

    # W1/W2 index_maps depend only on k, so both weight matrices are streamed from HBM once
    # per row tile -> multiply weight bytes by grid_i.
    cost = pl.CostEstimate(
        flops=2 * rows_p * dim * hidden_p + 2 * rows_p * hidden_p * out_dim_p,
        transcendentals=rows_p * hidden_p,
        bytes_accessed=(
            rows_p * dim * in_itemsize
            + grid_i * (dim * hidden_p + hidden_p * out_dim_p) * in_itemsize
            + rows_p * out_dim_p * out_itemsize
        ),
    )

    kernel = functools.partial(_ffn_kernel, approximate_gelu=approximate_gelu)

    out = pl.pallas_call(
        kernel,
        out_shape=jax.ShapeDtypeStruct((rows_p, out_dim_p), x.dtype),
        grid_spec=pltpu.PrefetchScalarGridSpec(
            num_scalar_prefetch=0,
            grid=grid,
            in_specs=[
                pl.BlockSpec((tm, dim), lambda i, k: (i, 0)),          # x row tile
                pl.BlockSpec((dim, tk), lambda i, k: (0, k)),          # W1 hidden slab
                pl.BlockSpec((1, tk), lambda i, k: (0, k)),            # b1 hidden slab
                pl.BlockSpec((tk, out_dim_p), lambda i, k: (k, 0)),    # W2 hidden slab
                pl.BlockSpec((1, out_dim_p), lambda i, k: (0, 0)),     # b2
            ],
            out_specs=pl.BlockSpec((tm, out_dim_p), lambda i, k: (i, 0)),
            scratch_shapes=[pltpu.VMEM((tm, out_dim_p), jnp.float32)],
        ),
        compiler_params=pltpu.CompilerParams(
            dimension_semantics=("parallel", "arbitrary"),
            vmem_limit_bytes=vmem_limit,
        ),
        cost_estimate=cost,
    )(x2, w1_p, b1_p, w2_p, b2_p)

    out = out[:rows, :out_dim]
    return out.reshape(*lead, out_dim)


def feed_forward_ref(x, w1, b1, w2, b2):
    h = jnp.dot(x, w1) + b1
    h = jax.nn.gelu(h, approximate=False)
    return jnp.dot(h, w2) + b2


if __name__ == "__main__":
    # Module config: FeedForward(dim=128, hidden_dim=256, dropout=0.1) in eval mode.
    dim, hidden_dim, out_dim = 128, 256, 128
    batch, seq = 2, 16  # input x: (batch, seq, dim) -> 32 total tokens

    key = jax.random.PRNGKey(0)
    kx, kw1, kb1, kw2, kb2, kw2b, kb2b = jax.random.split(key, 7)

    x = jax.random.normal(kx, (batch, seq, dim), dtype=jnp.float32)
    # Deterministic synthetic parameters (stored transposed: [in, out]).
    w1 = jax.random.normal(kw1, (dim, hidden_dim), dtype=jnp.float32) * 0.02
    b1 = jax.random.normal(kb1, (hidden_dim,), dtype=jnp.float32) * 0.02
    w2 = jax.random.normal(kw2, (hidden_dim, out_dim), dtype=jnp.float32) * 0.02
    b2 = jax.random.normal(kb2, (out_dim,), dtype=jnp.float32) * 0.02

    ref = feed_forward_ref(x, w1, b1, w2, b2)

    # 1) Generation-aware auto-tiled path.
    out_auto = jax.block_until_ready(feed_forward(x, w1, b1, w2, b2))
    # 2) Small explicit tiles to exercise both grid axes (row tiling + hidden accumulation).
    out_small = jax.block_until_ready(feed_forward(x, w1, b1, w2, b2, tm=16, tk=128))
    assert out_auto.shape == (batch, seq, out_dim)
    assert jnp.allclose(out_auto, ref, atol=1e-4, rtol=1e-4)
    assert jnp.allclose(out_small, ref, atol=1e-4, rtol=1e-4)

    # 3) Ragged out_dim (exercises lane-dense out_dim padding path).
    out_dim2 = 96
    w2b = jax.random.normal(kw2b, (hidden_dim, out_dim2), dtype=jnp.float32) * 0.02
    b2b = jax.random.normal(kb2b, (out_dim2,), dtype=jnp.float32) * 0.02
    out_ragged = jax.block_until_ready(feed_forward(x, w1, b1, w2b, b2b, tm=16, tk=128))
    ref_ragged = feed_forward_ref(x, w1, b1, w2b, b2b)
    assert out_ragged.shape == (batch, seq, out_dim2)
    assert jnp.allclose(out_ragged, ref_ragged, atol=1e-4, rtol=1e-4)

    print("KERNEL_OK")
</pallas_src>

<mosaic_0001>
module attributes {stable_mosaic.version = 11 : i64} {
  func.func @_ffn_kernel(%arg0: i32, %arg1: i32, %arg2: memref<32x128xf32, #tpu.memory_space<vmem>>, %arg3: memref<128x256xf32, #tpu.memory_space<vmem>>, %arg4: memref<1x256xf32, #tpu.memory_space<vmem>>, %arg5: memref<256x128xf32, #tpu.memory_space<vmem>>, %arg6: memref<1x128xf32, #tpu.memory_space<vmem>>, %arg7: memref<32x128xf32, #tpu.memory_space<vmem>>, %arg8: memref<32x128xf32, #tpu.memory_space<vmem>>) attributes {dimension_semantics = [#tpu.dimension_semantics<parallel>, #tpu.dimension_semantics<arbitrary>], iteration_bounds = array<i64: 1, 1>, scalar_prefetch = 0 : i64, scratch_operands = 1 : i64, tpu.core_type = #tpu.core_type<tc>, window_params = [{transform_indices = @transform_0, window_bounds = array<i64: 32, 128>}, {transform_indices = @transform_1, window_bounds = array<i64: 128, 256>}, {transform_indices = @transform_2, window_bounds = array<i64: 1, 256>}, {transform_indices = @transform_3, window_bounds = array<i64: 256, 128>}, {pipeline_mode = #tpu.pipeline_mode<synchronous>, transform_indices = @transform_4, window_bounds = array<i64: 1, 128>}, {transform_indices = @transform_5, window_bounds = array<i64: 32, 128>}]} {
    %c0 = arith.constant 0 : index
    %c0_0 = arith.constant 0 : index
    %0 = vector.load %arg2[%c0, %c0_0] : memref<32x128xf32, #tpu.memory_space<vmem>>, vector<32x128xf32>
    %c0_1 = arith.constant 0 : index
    %c0_2 = arith.constant 0 : index
    %1 = vector.load %arg3[%c0_1, %c0_2] : memref<128x256xf32, #tpu.memory_space<vmem>>, vector<128x256xf32>
    %cst = arith.constant dense<0.000000e+00> : vector<32x256xf32>
    %2 = tpu.matmul %0, %1, %cst {dimension_numbers = #tpu.dot_dimension_numbers<[1], [0], [0], [1], [0, 0, 1, 1], [], []>} : vector<32x128xf32>, vector<128x256xf32>, vector<32x256xf32> -> vector<32x256xf32>
    %c0_3 = arith.constant 0 : index
    %c0_4 = arith.constant 0 : index
    %3 = vector.load %arg4[%c0_3, %c0_4] : memref<1x256xf32, #tpu.memory_space<vmem>>, vector<1x256xf32>
    %4 = vector.broadcast %3 : vector<1x256xf32> to vector<32x256xf32>
    %5 = arith.addf %2, %4 : vector<32x256xf32>
    %cst_5 = arith.constant 5.000000e-01 : f32
    %6 = vector.broadcast %cst_5 : f32 to vector<32x256xf32>
    %7 = arith.mulf %6, %5 : vector<32x256xf32>
    %cst_6 = arith.constant 0.707106769 : f32
    %8 = vector.broadcast %cst_6 : f32 to vector<32x256xf32>
    %9 = arith.mulf %5, %8 : vector<32x256xf32>
    %10 = math.erf %9 : vector<32x256xf32>
    %cst_7 = arith.constant 1.000000e+00 : f32
    %11 = vector.broadcast %cst_7 : f32 to vector<32x256xf32>
    %12 = arith.addf %11, %10 : vector<32x256xf32>
    %13 = arith.mulf %7, %12 : vector<32x256xf32>
    %c0_8 = arith.constant 0 : index
    %c0_9 = arith.constant 0 : index
    %14 = vector.load %arg5[%c0_8, %c0_9] : memref<256x128xf32, #tpu.memory_space<vmem>>, vector<256x128xf32>
    %cst_10 = arith.constant dense<0.000000e+00> : vector<32x128xf32>
    %15 = tpu.matmul %13, %14, %cst_10 {dimension_numbers = #tpu.dot_dimension_numbers<[1], [0], [0], [1], [0, 0, 1, 1], [], []>} : vector<32x256xf32>, vector<256x128xf32>, vector<32x128xf32> -> vector<32x128xf32>
    %c0_i32 = arith.constant 0 : i32
    %16 = arith.cmpi eq, %arg1, %c0_i32 : i32
    %17 = arith.extui %16 : i1 to i32
    %c0_i32_11 = arith.constant 0 : i32
    %18 = arith.cmpi ne, %17, %c0_i32_11 : i32
    scf.if %18 {
      %c0_16 = arith.constant 0 : index
      %c0_17 = arith.constant 0 : index
      %25 = vector.load %arg6[%c0_16, %c0_17] : memref<1x128xf32, #tpu.memory_space<vmem>>, vector<1x128xf32>
      %26 = vector.broadcast %25 : vector<1x128xf32> to vector<32x128xf32>
      %27 = arith.addf %15, %26 : vector<32x128xf32>
      %c0_18 = arith.constant 0 : index
      %c0_19 = arith.constant 0 : index
      %28 = vector.load %arg8[%c0_18, %c0_19] : memref<32x128xf32, #tpu.memory_space<vmem>>, vector<32x128xf32>
      tpu.vector_store %arg8[%c0_18, %c0_19], %27 {strides = array<i32>} : memref<32x128xf32, #tpu.memory_space<vmem>>, vector<32x128xf32>,
    } else {
    }
    %c0_i32_12 = arith.constant 0 : i32
    %19 = arith.cmpi sgt, %arg1, %c0_i32_12 : i32
    %20 = arith.extui %19 : i1 to i32
    %c0_i32_13 = arith.constant 0 : i32
    %21 = arith.cmpi ne, %20, %c0_i32_13 : i32
    scf.if %21 {
      %c0_16 = arith.constant 0 : index
      %c0_17 = arith.constant 0 : index
      %25 = vector.load %arg8[%c0_16, %c0_17] : memref<32x128xf32, #tpu.memory_space<vmem>>, vector<32x128xf32>
      %26 = arith.addf %25, %15 : vector<32x128xf32>
      %c0_18 = arith.constant 0 : index
      %c0_19 = arith.constant 0 : index
      %27 = vector.load %arg8[%c0_18, %c0_19] : memref<32x128xf32, #tpu.memory_space<vmem>>, vector<32x128xf32>
      tpu.vector_store %arg8[%c0_18, %c0_19], %26 {strides = array<i32>} : memref<32x128xf32, #tpu.memory_space<vmem>>, vector<32x128xf32>,
    } else {
    }
    %c0_i32_14 = arith.constant 0 : i32
    %22 = arith.cmpi eq, %arg1, %c0_i32_14 : i32
    %23 = arith.extui %22 : i1 to i32
    %c0_i32_15 = arith.constant 0 : i32
    %24 = arith.cmpi ne, %23, %c0_i32_15 : i32
    scf.if %24 {
      %c0_16 = arith.constant 0 : index
      %c0_17 = arith.constant 0 : index
      %25 = vector.load %arg8[%c0_16, %c0_17] : memref<32x128xf32, #tpu.memory_space<vmem>>, vector<32x128xf32>
      %c0_18 = arith.constant 0 : index
      %c0_19 = arith.constant 0 : index
      %26 = vector.load %arg7[%c0_18, %c0_19] : memref<32x128xf32, #tpu.memory_space<vmem>>, vector<32x128xf32>
      tpu.vector_store %arg7[%c0_18, %c0_19], %25 {strides = array<i32>} : memref<32x128xf32, #tpu.memory_space<vmem>>, vector<32x128xf32>,
    } else {
    }
    return
  }
  func.func @transform_0(%arg0: i32, %arg1: i32) -> (i32, i32) {
    %c0_i32 = arith.constant 0 : i32
    %c0_i32_0 = arith.constant 0 : i32
    return %arg0, %c0_i32 : i32, i32
  }
  func.func @transform_1(%arg0: i32, %arg1: i32) -> (i32, i32) {
    %c0_i32 = arith.constant 0 : i32
    %c0_i32_0 = arith.constant 0 : i32
    return %c0_i32, %arg1 : i32, i32
  }
  func.func @transform_2(%arg0: i32, %arg1: i32) -> (i32, i32) {
    %c0_i32 = arith.constant 0 : i32
    %c0_i32_0 = arith.constant 0 : i32
    return %c0_i32, %arg1 : i32, i32
  }
  func.func @transform_3(%arg0: i32, %arg1: i32) -> (i32, i32) {
    %c0_i32 = arith.constant 0 : i32
    %c0_i32_0 = arith.constant 0 : i32
    return %arg1, %c0_i32 : i32, i32
  }
  func.func @transform_4(%arg0: i32, %arg1: i32) -> (i32, i32) {
    %c0_i32 = arith.constant 0 : i32
    %c0_i32_0 = arith.constant 0 : i32
    %c0_i32_1 = arith.constant 0 : i32
    return %c0_i32, %c0_i32_0 : i32, i32
  }
  func.func @transform_5(%arg0: i32, %arg1: i32) -> (i32, i32) {
    %c0_i32 = arith.constant 0 : i32
    %c0_i32_0 = arith.constant 0 : i32
    return %arg0, %c0_i32 : i32, i32
  }
}

</mosaic_0001>

<llo_original>
// kernel: tpu_custom_call.1
$region0: #{tpu_custom_call.1}
  #allocation0 [shape = 'u32[]', space=smem, size = 0x4, offset = 0x4, fixed_abs, tag = 'smem constant byte address 0x4 - core index']
  #allocation1 [shape = 'u32[144,128]{1,0:T(1,128)}', space=vmem, size = 0x12000, scoped, tag = 'internal scratch']
  #allocation2 [shape = 'f32[32,128]{1,0:T(8,128)}', space=vmem, size = 0x4000, scoped, tag = 'scratch operand']
  %s0 = inlined_call_operand.hbm [shape: f32[32,128], index: 0, kind: input, shape index: {}]
  %s1 = inlined_call_operand.hbm [shape: f32[128,256], index: 1, kind: input, shape index: {}]
  %s2 = inlined_call_operand.vmem [shape: f32[1,256], index: 2, kind: input, shape index: {}]
  %s3 = inlined_call_operand.hbm [shape: f32[256,128], index: 3, kind: input, shape index: {}]
  %s4 = inlined_call_operand.vmem [shape: f32[1,128], index: 4, kind: input, shape index: {}]
  %s5 = inlined_call_operand.hbm [shape: f32[32,128], index: 5, kind: output, shape index: {}]
  %s6 = sld [smem:[#allocation0]]
  $region54: #{tpu_custom_call.1} parent=0
    _
  %s8 = ssub.s32 1, %s6
  %s9 = scalar_select 0, %s8, %s6
  $region1: #{tpu_custom_call.1} parent=0
    #allocation3 [shape = 'u8[16384]{0}', space=vmem, size = 0x4000, scoped, tag = 'input window, operand 0, single buffered']
    #allocation4 [shape = 's32[1]{0}', space=sflag, size = 0x4, scoped, tag = 'scoped memory for tpu_custom_call.1']
    #allocation5 [shape = 's32[1]{0}', space=sflag, size = 0x4, scoped, tag = 'scoped memory for tpu_custom_call.1']
    #allocation6 [shape = 'u8[131072]{0}', space=vmem, size = 0x20000, scoped, tag = 'input window, operand 1, single buffered']
    #allocation7 [shape = 's32[1]{0}', space=sflag, size = 0x4, scoped, tag = 'scoped memory for tpu_custom_call.1']
    #allocation8 [shape = 'u8[131072]{0}', space=vmem, size = 0x20000, scoped, tag = 'input window, operand 3, single buffered']
    #allocation9 [shape = 'u8[16384]{0}', space=vmem, size = 0x4000, scoped, tag = 'output window, operand 0, single buffered']
    %10 = vsyncpa [#allocation4], 0
    %11 = vsyncpa [#allocation7], 0
    %12 = vsyncpa [#allocation5], 0
    // Predicated region
    $region2: #{tpu_custom_call.1} parent=1 // pred_check
      _
    $region3: #{tpu_custom_call.1} parent=1 // pred_check_branch
      %14 = sbr.rel (0) target = $region5
    $region4: #{tpu_custom_call.1} parent=1 // pred_region
      %s16 = ssub.s32 512, 512
      %17 = vsyncadd [#allocation4], %s16
      %s18 = sshll.u32 [#allocation3], 4
      %s19 = int_to_ptr.vmem [resolvable:$true] %s18
      %24 = dma.hbm_to_vmem [thread:$0]  %s0, 512, %s19, [#allocation4], 128, 128, 8
    $region5: #{tpu_custom_call.1} parent=1 // pred_fallthru
      _
    // Predicated region
    $region6: #{tpu_custom_call.1} parent=1 // pred_check
      _
    $region7: #{tpu_custom_call.1} parent=1 // pred_check_branch
      %26 = sbr.rel (0) target = $region9
    $region8: #{tpu_custom_call.1} parent=1 // pred_region
      %s28 = ssub.s32 4096, 4096
      %29 = vsyncadd [#allocation7], %s28
      %s30 = sshll.u32 [#allocation6], 4
      %s31 = int_to_ptr.vmem [resolvable:$true] %s30
      %36 = dma.hbm_to_vmem [thread:$0]  %s1, 4096, %s31, [#allocation7], 256, 256, 16
    $region9: #{tpu_custom_call.1} parent=1 // pred_fallthru
      _
    // Predicated region
    $region10: #{tpu_custom_call.1} parent=1 // pred_check
      _
    $region11: #{tpu_custom_call.1} parent=1 // pred_check_branch
      %38 = sbr.rel (0) target = $region13
    $region12: #{tpu_custom_call.1} parent=1 // pred_region
      _
    $region13: #{tpu_custom_call.1} parent=1 // pred_fallthru
      _
    // Predicated region
    $region14: #{tpu_custom_call.1} parent=1 // pred_check
      _
    $region15: #{tpu_custom_call.1} parent=1 // pred_check_branch
      %40 = sbr.rel (0) target = $region17
    $region16: #{tpu_custom_call.1} parent=1 // pred_region
      %s42 = ssub.s32 4096, 4096
      %43 = vsyncadd [#allocation7], %s42
      %s44 = sshll.u32 [#allocation8], 4
      %s45 = int_to_ptr.vmem [resolvable:$true] %s44
      %50 = dma.hbm_to_vmem [thread:$0]  %s3, 4096, %s45, [#allocation7], 128, 128, 8
    $region17: #{tpu_custom_call.1} parent=1 // pred_fallthru
      _
    // Predicated region
    $region18: #{tpu_custom_call.1} parent=1 // pred_check
      _
    $region19: #{tpu_custom_call.1} parent=1 // pred_check_branch
      %52 = sbr.rel (0) target = $region21
    $region20: #{tpu_custom_call.1} parent=1 // pred_region
      _
    $region21: #{tpu_custom_call.1} parent=1 // pred_fallthru
      _
    // Predicated region
    $region22: #{tpu_custom_call.1} parent=1 // pred_check
      _
    $region23: #{tpu_custom_call.1} parent=1 // pred_check_branch
      %54 = sbr.rel (0) target = $region25
    $region24: #{tpu_custom_call.1} parent=1 // pred_region
      %55 = dma.done [#allocation4], 512
    $region25: #{tpu_custom_call.1} parent=1 // pred_fallthru
      _
    // Predicated region
    $region26: #{tpu_custom_call.1} parent=1 // pred_check
      _
    $region27: #{tpu_custom_call.1} parent=1 // pred_check_branch
      %57 = sbr.rel (0) target = $region29
    $region28: #{tpu_custom_call.1} parent=1 // pred_region
      %58 = dma.done [#allocation7], 4096
    $region29: #{tpu_custom_call.1} parent=1 // pred_fallthru
      _
    // Predicated region
    $region30: #{tpu_custom_call.1} parent=1 // pred_check
      _
    $region31: #{tpu_custom_call.1} parent=1 // pred_check_branch
      %60 = sbr.rel (0) target = $region33
    $region32: #{tpu_custom_call.1} parent=1 // pred_region
      %61 = dma.done [#allocation7], 4096
    $region33: #{tpu_custom_call.1} parent=1 // pred_fallthru
      _
    %v62 = vld [vmem:[#allocation3] sm:$0xff]
    %v63 = vld [vmem:[#allocation3 + $0x8] sm:$0xff]
    %v64 = vld [vmem:[#allocation3 + $0x10] sm:$0xff]
    %v65 = vld [vmem:[#allocation3 + $0x18] sm:$0xff]
    %v66 = vld [vmem:[#allocation6] sm:$0xff]
    %v67 = vld [vmem:[#allocation6 + $0x8] sm:$0xff]
    %v68 = vld [vmem:[#allocation6 + $0x10] sm:$0xff]
    %v69 = vld [vmem:[#allocation6 + $0x18] sm:$0xff]
    %v70 = vld [vmem:[#allocation6 + $0x20] sm:$0xff]
    %v71 = vld [vmem:[#allocation6 + $0x28] sm:$0xff]
    %v72 = vld [vmem:[#allocation6 + $0x30] sm:$0xff]
    %v73 = vld [vmem:[#allocation6 + $0x38] sm:$0xff]
    %v74 = vld [vmem:[#allocation6 + $0x40] sm:$0xff]
    %v75 = vld [vmem:[#allocation6 + $0x48] sm:$0xff]
    %v76 = vld [vmem:[#allocation6 + $0x50] sm:$0xff]
    %v77 = vld [vmem:[#allocation6 + $0x58] sm:$0xff]
    %v78 = vld [vmem:[#allocation6 + $0x60] sm:$0xff]
    %v79 = vld [vmem:[#allocation6 + $0x68] sm:$0xff]
    %v80 = vld [vmem:[#allocation6 + $0x70] sm:$0xff]
    %v81 = vld [vmem:[#allocation6 + $0x78] sm:$0xff]
    %v82 = vld [vmem:[#allocation6 + $0x80] sm:$0xff]
    %v83 = vld [vmem:[#allocation6 + $0x88] sm:$0xff]
    %v84 = vld [vmem:[#allocation6 + $0x90] sm:$0xff]
    %v85 = vld [vmem:[#allocation6 + $0x98] sm:$0xff]
    %v86 = vld [vmem:[#allocation6 + $0xa0] sm:$0xff]
    %v87 = vld [vmem:[#allocation6 + $0xa8] sm:$0xff]
    %v88 = vld [vmem:[#allocation6 + $0xb0] sm:$0xff]
    %v89 = vld [vmem:[#allocation6 + $0xb8] sm:$0xff]
    %v90 = vld [vmem:[#allocation6 + $0xc0] sm:$0xff]
    %v91 = vld [vmem:[#allocation6 + $0xc8] sm:$0xff]
    %v92 = vld [vmem:[#allocation6 + $0xd0] sm:$0xff]
    %v93 = vld [vmem:[#allocation6 + $0xd8] sm:$0xff]
    %v94 = vld [vmem:[#allocation6 + $0xe0] sm:$0xff]
    %v95 = vld [vmem:[#allocation6 + $0xe8] sm:$0xff]
    %v96 = vld [vmem:[#allocation6 + $0xf0] sm:$0xff]
    %v97 = vld [vmem:[#allocation6 + $0xf8] sm:$0xff]
    %v98 = vld [vmem:[%s2] sm:$0x3]
    %v100 = vlaneseq
    %v101 = vshrl.u32 %v100, 7
    %v102 = vsub.s32 0, %v101
    %v103 = vrot.slane %v98, %v102
    %v104 = vlaneseq
    %v105 = vshrl.u32 %v104, 7
    %v106 = vsub.s32 1, %v105
    %v107 = vrot.slane %v98, %v106
    %110 = vmatprep.subr.mxu0 %v67
    %111 = vmatpush1.msra.mxu0 %v66
    %112 = vmatprep.subr.mxu0 %v69
    %113 = vmatpush1.msra.mxu0 %v68
    %114 = vmatprep.subr.mxu0 %v71
    %115 = vmatpush1.msra.mxu0 %v70
    %116 = vmatprep.subr.mxu0 %v73
    %117 = vmatpush1.msra.mxu0 %v72
    %118 = vmatprep.subr.mxu0 %v75
    %119 = vmatpush1.msra.mxu0 %v74
    %120 = vmatprep.subr.mxu0 %v77
    %121 = vmatpush1.msra.mxu0 %v76
    %122 = vmatprep.subr.mxu0 %v79
    %123 = vmatpush1.msra.mxu0 %v78
    %124 = vmatprep.subr.mxu0 %v81
    %125 = vmatpush1.msra.mxu0 %v80
    %126 = vmatprep.subr.mxu0 %v83
    %127 = vmatpush1.msra.mxu0 %v82
    %128 = vmatprep.subr.mxu0 %v85
    %129 = vmatpush1.msra.mxu0 %v84
    %130 = vmatprep.subr.mxu0 %v87
    %131 = vmatpush1.msra.mxu0 %v86
    %132 = vmatprep.subr.mxu0 %v89
    %133 = vmatpush1.msra.mxu0 %v88
    %134 = vmatprep.subr.mxu0 %v91
    %135 = vmatpush1.msra.mxu0 %v90
    %136 = vmatprep.subr.mxu0 %v93
    %137 = vmatpush1.msra.mxu0 %v92
    %138 = vmatprep.subr.mxu0 %v95
    %139 = vmatpush1.msra.mxu0 %v94
    %140 = vmatprep.subr.mxu0 %v97
    %141 = vmatpush1.msra.mxu0 %v96
    %142 = vmatprep.subr.mxu0 0.0
    %143 = vmatpush1.msra.mxu0 0.0
    %144 = vmatprep.subr.mxu0 0.0
    %145 = vmatpush1.msra.mxu0 0.0
    %146 = vmatprep.subr.mxu0 0.0
    %147 = vmatpush1.msra.mxu0 0.0
    %148 = vmatprep.subr.mxu0 0.0
    %149 = vmatpush1.msra.mxu0 0.0
    %150 = vmatprep.subr.mxu0 0.0
    %151 = vmatpush1.msra.mxu0 0.0
    %152 = vmatprep.subr.mxu0 0.0
    %153 = vmatpush1.msra.mxu0 0.0
    %154 = vmatprep.subr.mxu0 0.0
    %155 = vmatpush1.msra.mxu0 0.0
    %156 = vmatprep.subr.mxu0 0.0
    %157 = vmatpush1.msra.mxu0 0.0
    %158 = vmatprep.subr.mxu0 0.0
    %159 = vmatpush1.msra.mxu0 0.0
    %160 = vmatprep.subr.mxu0 0.0
    %161 = vmatpush1.msra.mxu0 0.0
    %162 = vmatprep.subr.mxu0 0.0
    %163 = vmatpush1.msra.mxu0 0.0
    %164 = vmatprep.subr.mxu0 0.0
    %165 = vmatpush1.msra.mxu0 0.0
    %166 = vmatprep.subr.mxu0 0.0
    %167 = vmatpush1.msra.mxu0 0.0
    %168 = vmatprep.subr.mxu0 0.0
    %169 = vmatpush1.msra.mxu0 0.0
    %170 = vmatprep.subr.mxu0 0.0
    %171 = vmatpush1.msra.mxu0 0.0
    %172 = vmatprep.subr.mxu0 0.0
    %173 = vmatpush1.msra.mxu0 0.0
    %174 = vmatprep.mubr.f32.mxu0 0.0
    %175 = vmatmul.mubr.f32.gmra.mrb[0].mxu0 %v62
    %v176 = vpop.f32.mrb[0].mxu0
    %v177 = vadd.f32 %v103, %v176
    %v178 = vpop.f32.mrb[0].mxu0
    %v179 = vadd.f32 %v107, %v178
    %180 = vmatprep.mubr.f32.mxu0 0.0
    %181 = vmatmul.mubr.f32.gmra.mrb[0].mxu0 %v63
    %v182 = vpop.f32.mrb[0].mxu0
    %v183 = vadd.f32 %v103, %v182
    %v184 = vpop.f32.mrb[0].mxu0
    %v185 = vadd.f32 %v107, %v184
    %186 = vmatprep.mubr.f32.mxu0 0.0
    %187 = vmatmul.mubr.f32.gmra.mrb[0].mxu0 %v64
    %v188 = vpop.f32.mrb[0].mxu0
    %v189 = vadd.f32 %v103, %v188
    %v190 = vpop.f32.mrb[0].mxu0
    %v191 = vadd.f32 %v107, %v190
    %192 = vmatprep.mubr.f32.mxu0 0.0
    %193 = vmatmul.mubr.f32.gmra.mrb[0].mxu0 %v65
    %v194 = vpop.f32.mrb[0].mxu0
    %v195 = vadd.f32 %v103, %v194
    %v196 = vpop.f32.mrb[0].mxu0
    %v197 = vadd.f32 %v107, %v196
    %198 = vdwg.mxu0
    %v199 = vmul.f32 %v177, 0.5
    %v200 = vmul.f32 %v179, 0.5
    %v201 = vmul.f32 %v183, 0.5
    %v202 = vmul.f32 %v185, 0.5
    %v203 = vmul.f32 %v189, 0.5
    %v204 = vmul.f32 %v191, 0.5
    %v205 = vmul.f32 %v195, 0.5
    %v206 = vmul.f32 %v197, 0.5
    %v207 = vmul.f32 %v177, 0.70710677
    %v208 = vmul.f32 %v179, 0.70710677
    %v209 = vmul.f32 %v183, 0.70710677
    %v210 = vmul.f32 %v185, 0.70710677
    %v211 = vmul.f32 %v189, 0.70710677
    %v212 = vmul.f32 %v191, 0.70710677
    %v213 = vmul.f32 %v195, 0.70710677
    %v214 = vmul.f32 %v197, 0.70710677
    %v215 = verf.f32.pop %v207
    %v216 = verf.f32.pop %v208
    %v217 = verf.f32.pop %v209
    %v218 = verf.f32.pop %v210
    %v219 = verf.f32.pop %v211
    %v220 = verf.f32.pop %v212
    %v221 = verf.f32.pop %v213
    %v222 = verf.f32.pop %v214
    %v223 = vadd.f32 %v215, 1.0
    %v224 = vadd.f32 %v216, 1.0
    %v225 = vadd.f32 %v217, 1.0
    %v226 = vadd.f32 %v218, 1.0
    %v227 = vadd.f32 %v219, 1.0
    %v228 = vadd.f32 %v220, 1.0
    %v229 = vadd.f32 %v221, 1.0
    %v230 = vadd.f32 %v222, 1.0
    %v231 = vmul.f32 %v199, %v223
    %v232 = vmul.f32 %v200, %v224
    %v233 = vmul.f32 %v201, %v225
    %v234 = vmul.f32 %v202, %v226
    %v235 = vmul.f32 %v203, %v227
    %v236 = vmul.f32 %v204, %v228
    %v237 = vmul.f32 %v205, %v229
    %v238 = vmul.f32 %v206, %v230
    %v239 = vld [vmem:[#allocation8] sm:$0xff]
    %v240 = vld [vmem:[#allocation8 + $0x8] sm:$0xff]
    %v241 = vld [vmem:[#allocation8 + $0x10] sm:$0xff]
    %v242 = vld [vmem:[#allocation8 + $0x18] sm:$0xff]
    %v243 = vld [vmem:[#allocation8 + $0x20] sm:$0xff]
    %v244 = vld [vmem:[#allocation8 + $0x28] sm:$0xff]
    %v245 = vld [vmem:[#allocation8 + $0x30] sm:$0xff]
    %v246 = vld [vmem:[#allocation8 + $0x38] sm:$0xff]
    %v247 = vld [vmem:[#allocation8 + $0x40] sm:$0xff]
    %v248 = vld [vmem:[#allocation8 + $0x48] sm:$0xff]
    %v249 = vld [vmem:[#allocation8 + $0x50] sm:$0xff]
    %v250 = vld [vmem:[#allocation8 + $0x58] sm:$0xff]
    %v251 = vld [vmem:[#allocation8 + $0x60] sm:$0xff]
    %v252 = vld [vmem:[#allocation8 + $0x68] sm:$0xff]
    %v253 = vld [vmem:[#allocation8 + $0x70] sm:$0xff]
    %v254 = vld [vmem:[#allocation8 + $0x78] sm:$0xff]
    %v255 = vld [vmem:[#allocation8 + $0x80] sm:$0xff]
    %v256 = vld [vmem:[#allocation8 + $0x88] sm:$0xff]
    %v257 = vld [vmem:[#allocation8 + $0x90] sm:$0xff]
    %v258 = vld [vmem:[#allocation8 + $0x98] sm:$0xff]
    %v259 = vld [vmem:[#allocation8 + $0xa0] sm:$0xff]
    %v260 = vld [vmem:[#allocation8 + $0xa8] sm:$0xff]
    %v261 = vld [vmem:[#allocation8 + $0xb0] sm:$0xff]
    %v262 = vld [vmem:[#allocation8 + $0xb8] sm:$0xff]
    %v263 = vld [vmem:[#allocation8 + $0xc0] sm:$0xff]
    %v264 = vld [vmem:[#allocation8 + $0xc8] sm:$0xff]
    %v265 = vld [vmem:[#allocation8 + $0xd0] sm:$0xff]
    %v266 = vld [vmem:[#allocation8 + $0xd8] sm:$0xff]
    %v267 = vld [vmem:[#allocation8 + $0xe0] sm:$0xff]
    %v268 = vld [vmem:[#allocation8 + $0xe8] sm:$0xff]
    %v269 = vld [vmem:[#allocation8 + $0xf0] sm:$0xff]
    %v270 = vld [vmem:[#allocation8 + $0xf8] sm:$0xff]
    %271 = vmatprep.subr.mxu0 0.0
    %272 = vmatpush1.msra.mxu0 %v239
    %273 = vmatprep.subr.mxu0 0.0
    %274 = vmatpush1.msra.mxu0 %v240
    %275 = vmatprep.subr.mxu0 0.0
    %276 = vmatpush1.msra.mxu0 %v241
    %277 = vmatprep.subr.mxu0 0.0
    %278 = vmatpush1.msra.mxu0 %v242
    %279 = vmatprep.subr.mxu0 0.0
    %280 = vmatpush1.msra.mxu0 %v243
    %281 = vmatprep.subr.mxu0 0.0
    %282 = vmatpush1.msra.mxu0 %v244
    %283 = vmatprep.subr.mxu0 0.0
    %284 = vmatpush1.msra.mxu0 %v245
    %285 = vmatprep.subr.mxu0 0.0
    %286 = vmatpush1.msra.mxu0 %v246
    %287 = vmatprep.subr.mxu0 0.0
    %288 = vmatpush1.msra.mxu0 %v247
    %289 = vmatprep.subr.mxu0 0.0
    %290 = vmatpush1.msra.mxu0 %v248
    %291 = vmatprep.subr.mxu0 0.0
    %292 = vmatpush1.msra.mxu0 %v249
    %293 = vmatprep.subr.mxu0 0.0
    %294 = vmatpush1.msra.mxu0 %v250
    %295 = vmatprep.subr.mxu0 0.0
    %296 = vmatpush1.msra.mxu0 %v251
    %297 = vmatprep.subr.mxu0 0.0
    %298 = vmatpush1.msra.mxu0 %v252
    %299 = vmatprep.subr.mxu0 0.0
    %300 = vmatpush1.msra.mxu0 %v253
    %301 = vmatprep.subr.mxu0 0.0
    %302 = vmatpush1.msra.mxu0 %v254
    %303 = vmatprep.subr.mxu0 0.0
    %304 = vmatpush1.msra.mxu0 %v255
    %305 = vmatprep.subr.mxu0 0.0
    %306 = vmatpush1.msra.mxu0 %v256
    %307 = vmatprep.subr.mxu0 0.0
    %308 = vmatpush1.msra.mxu0 %v257
    %309 = vmatprep.subr.mxu0 0.0
    %310 = vmatpush1.msra.mxu0 %v258
    %311 = vmatprep.subr.mxu0 0.0
    %312 = vmatpush1.msra.mxu0 %v259
    %313 = vmatprep.subr.mxu0 0.0
    %314 = vmatpush1.msra.mxu0 %v260
    %315 = vmatprep.subr.mxu0 0.0
    %316 = vmatpush1.msra.mxu0 %v261
    %317 = vmatprep.subr.mxu0 0.0
    %318 = vmatpush1.msra.mxu0 %v262
    %319 = vmatprep.subr.mxu0 0.0
    %320 = vmatpush1.msra.mxu0 %v263
    %321 = vmatprep.subr.mxu0 0.0
    %322 = vmatpush1.msra.mxu0 %v264
    %323 = vmatprep.subr.mxu0 0.0
    %324 = vmatpush1.msra.mxu0 %v265
    %325 = vmatprep.subr.mxu0 0.0
    %326 = vmatpush1.msra.mxu0 %v266
    %327 = vmatprep.subr.mxu0 0.0
    %328 = vmatpush1.msra.mxu0 %v267
    %329 = vmatprep.subr.mxu0 0.0
    %330 = vmatpush1.msra.mxu0 %v268
    %331 = vmatprep.subr.mxu0 0.0
    %332 = vmatpush1.msra.mxu0 %v269
    %333 = vmatprep.subr.mxu0 0.0
    %334 = vmatpush1.msra.mxu0 %v270
    %335 = vmatprep.mubr.f32.mxu0 %v232
    %336 = vmatmul.mubr.f32.gmra.mrb[0].mxu0 %v231
    %v337 = vpop.f32.mrb[0].mxu0
    %v338 = vadd.f32 0.0, %v337
    %v339 = vpop.f32.mrb[0].mxu0
    %340 = vmatprep.mubr.f32.mxu0 %v234
    %341 = vmatmul.mubr.f32.gmra.mrb[0].mxu0 %v233
    %v342 = vpop.f32.mrb[0].mxu0
    %v343 = vadd.f32 0.0, %v342
    %v344 = vpop.f32.mrb[0].mxu0
    %345 = vmatprep.mubr.f32.mxu0 %v236
    %346 = vmatmul.mubr.f32.gmra.mrb[0].mxu0 %v235
    %v347 = vpop.f32.mrb[0].mxu0
    %v348 = vadd.f32 0.0, %v347
    %v349 = vpop.f32.mrb[0].mxu0
    %350 = vmatprep.mubr.f32.mxu0 %v238
    %351 = vmatmul.mubr.f32.gmra.mrb[0].mxu0 %v237
    %v352 = vpop.f32.mrb[0].mxu0
    %v353 = vadd.f32 0.0, %v352
    %v354 = vpop.f32.mrb[0].mxu0
    %355 = vdwg.mxu0
    %p356 = scmp.eq.s32.totalorder 0, 0
    // Predicated region
    $region34: #{tpu_custom_call.1} parent=1 // pred_check
      %p357 = pneg %p356
    $region35: #{tpu_custom_call.1} parent=1 // pred_check_branch
      %359 = sbr.rel (%p357) target = $region37
    $region36: #{tpu_custom_call.1} parent=1 // pred_region
      %v360 = vld [vmem:[%s4] sm:$0x1]
      %v362 = vlaneseq
      %v363 = vshrl.u32 %v362, 7
      %v364 = vsub.s32 0, %v363
      %v365 = vrot.slane %v360, %v364
      %v367 = vadd.f32 %v338, %v365
      %v368 = vadd.f32 %v343, %v365
      %v369 = vadd.f32 %v348, %v365
      %v370 = vadd.f32 %v353, %v365
      %371 = vst [vmem:[#allocation2] sm:$0xff] %v367
      %372 = vst [vmem:[#allocation2 + $0x8] sm:$0xff] %v368
      %373 = vst [vmem:[#allocation2 + $0x10] sm:$0xff] %v369
      %374 = vst [vmem:[#allocation2 + $0x18] sm:$0xff] %v370
    $region37: #{tpu_custom_call.1} parent=1 // pred_fallthru
      _
    %p375 = scmp.gt.s32.totalorder 0, 0
    // Predicated region
    $region38: #{tpu_custom_call.1} parent=1 // pred_check
      %p376 = pneg %p375
    $region39: #{tpu_custom_call.1} parent=1 // pred_check_branch
      %378 = sbr.rel (%p376) target = $region41
    $region40: #{tpu_custom_call.1} parent=1 // pred_region
      %v379 = vld [vmem:[#allocation2] sm:$0xff]
      %v380 = vld [vmem:[#allocation2 + $0x8] sm:$0xff]
      %v381 = vld [vmem:[#allocation2 + $0x10] sm:$0xff]
      %v382 = vld [vmem:[#allocation2 + $0x18] sm:$0xff]
      %v383 = vadd.f32 %v379, %v338
      %v384 = vadd.f32 %v380, %v343
      %v385 = vadd.f32 %v381, %v348
      %v386 = vadd.f32 %v382, %v353
      %387 = vst [vmem:[#allocation2] sm:$0xff] %v383
      %388 = vst [vmem:[#allocation2 + $0x8] sm:$0xff] %v384
      %389 = vst [vmem:[#allocation2 + $0x10] sm:$0xff] %v385
      %390 = vst [vmem:[#allocation2 + $0x18] sm:$0xff] %v386
    $region41: #{tpu_custom_call.1} parent=1 // pred_fallthru
      _
    // Predicated region
    $region42: #{tpu_custom_call.1} parent=1 // pred_check
      %p391 = pneg %p356
    $region43: #{tpu_custom_call.1} parent=1 // pred_check_branch
      %393 = sbr.rel (%p391) target = $region45
    $region44: #{tpu_custom_call.1} parent=1 // pred_region
      %v394 = vld [vmem:[#allocation2] sm:$0xff]
      %v395 = vld [vmem:[#allocation2 + $0x8] sm:$0xff]
      %v396 = vld [vmem:[#allocation2 + $0x10] sm:$0xff]
      %v397 = vld [vmem:[#allocation2 + $0x18] sm:$0xff]
      %398 = vst [vmem:[#allocation9] sm:$0xff] %v394
      %399 = vst [vmem:[#allocation9 + $0x8] sm:$0xff] %v395
      %400 = vst [vmem:[#allocation9 + $0x10] sm:$0xff] %v396
      %401 = vst [vmem:[#allocation9 + $0x18] sm:$0xff] %v397
    $region45: #{tpu_custom_call.1} parent=1 // pred_fallthru
      _
    // Predicated region
    $region46: #{tpu_custom_call.1} parent=1 // pred_check
      _
    $region47: #{tpu_custom_call.1} parent=1 // pred_check_branch
      %403 = sbr.rel (0) target = $region49
    $region48: #{tpu_custom_call.1} parent=1 // pred_region
      %s405 = ssub.s32 512, 512
      %406 = vsyncadd [#allocation5], %s405
      %s407 = sshll.u32 [#allocation9], 4
      %s408 = int_to_ptr.vmem [resolvable:$true] %s407
      %413 = dma.vmem_to_hbm [thread:$0]  %s408, 512, %s5, [#allocation5], 128, 128, 8
    $region49: #{tpu_custom_call.1} parent=1 // pred_fallthru
      _
    // Predicated region
    $region50: #{tpu_custom_call.1} parent=1 // pred_check
      _
    $region51: #{tpu_custom_call.1} parent=1 // pred_check_branch
      %415 = sbr.rel (0) target = $region53
    $region52: #{tpu_custom_call.1} parent=1 // pred_region
      %416 = dma.done [#allocation5], 512
    $region53: #{tpu_custom_call.1} parent=1 // pred_fallthru
      _
    %417 = vsyncpa [#allocation4], 1
    %418 = vsyncpa [#allocation7], 1
    %419 = vsyncpa [#allocation5], 1

</llo_original>
